<compile_context>
chip_gen: v7x
topology: tpu7x:2x2x1
jax: 0.10.0
libtpu: 0.0.40
codegen_flags: <defaults>
</compile_context>

<pallas_src>
import math

import jax
import jax.numpy as jnp
from jax.experimental import pallas as pl
from jax.experimental.pallas import tpu as pltpu


def make_pe(d_model: int, max_len: int = 1000) -> jnp.ndarray:
    """Deterministic positional-encoding buffer, shape (1, max_len, d_model)."""
    position = jnp.arange(max_len, dtype=jnp.float32)[:, None]            # (max_len, 1)
    div_term = jnp.exp(
        jnp.arange(0, d_model, 2, dtype=jnp.float32)
        * (-math.log(10000.0) / d_model)
    )                                                                      # (d_model//2,)
    angles = position * div_term                                           # (max_len, d_model//2)
    pe = jnp.zeros((max_len, d_model), dtype=jnp.float32)
    pe = pe.at[:, 0::2].set(jnp.sin(angles))
    pe = pe.at[:, 1::2].set(jnp.cos(angles))
    return pe[None]                                                        # (1, max_len, d_model)


def _pe_add_kernel(x_ref, pe_ref, o_ref):
    # x_ref: (TB, TN) lane-dense rows; pe_ref: (1, TN) shared row.
    # (1, TN) + (TB, TN) is a sublane broadcast on the VPU -> single vadd stream.
    o_ref[...] = x_ref[...] + pe_ref[...]


def _choose_tiles(B: int, N: int, itemsize: int):
    """Pick (TB, TN) so each x tile is ~<= 4 MiB, the lane axis stays either
    full-width or a multiple of 128, and the (8,128) block constraints hold.
    ~4 MiB tiles keep double-buffered in+out+pe (< ~20 MiB) well inside the
    48 MiB VMEM limit (v7x has 64 MiB physical; v5e/v6e have 128 MiB)."""
    TILE_TARGET = 4 * 1024 * 1024
    row_bytes = N * itemsize

    if row_bytes <= TILE_TARGET:
        tn = N                                   # full-width rows (block dim == array dim)
        want_tb = max(1, TILE_TARGET // row_bytes)
        if B <= want_tb:
            tb = B                               # single row-block covers all of B
        else:
            # Largest multiple-of-8 divisor of B that is <= want_tb; else whole B.
            tb = B
            start = (min(want_tb, B) // 8) * 8
            for d in range(start, 7, -8):
                if B % d == 0:
                    tb = d
                    break
    else:
        # Very wide rows: keep a small row block and tile the lane axis too.
        if B <= 8 or B % 8 != 0:
            tb = B
        else:
            tb = 8
        tn = N
        if N % 128 == 0:
            per = max(1, TILE_TARGET // (max(tb, 1) * 128 * itemsize))
            k = per
            while k > 1 and (N % (k * 128)) != 0:
                k -= 1
            tn = k * 128
    return tb, tn


def positional_encoding_forward(x: jnp.ndarray, pe: jnp.ndarray,
                                d_model: int, max_len: int) -> jnp.ndarray:
    """Reproduces PositionalEncoding.forward: x + pe[:, :x.shape[0]]."""
    if x.shape[1] > max_len:
        # Original module re-inits itself with the larger max_len; recompute buffer.
        max_len = x.shape[1]
        pe = make_pe(d_model, max_len)

    B, S, D = x.shape
    assert D == d_model

    if B > max_len:
        raise ValueError(
            f"x.shape[0]={B} > max_len={max_len}: pe[:, :B] would silently truncate "
            f"(the original module only grows max_len based on x.shape[1]).")

    # Resolve the (quirky) broadcast of pe[:, :B] (shape (1, B, D)) against x (B, S, D).
    if B == S or B == 1:
        if B == S:
            # out[b, s, d] = x[b, s, d] + pe[0, s, d]
            pe_add = pe[0, :S, :]                               # (S, D)
        else:
            # B == 1: out[0, s, d] = x[0, s, d] + pe[0, 0, d]
            pe_add = jnp.broadcast_to(pe[0, :1, :], (S, D))     # (S, D), tiny
    elif S == 1 and B > 1:
        # PyTorch would produce an output of shape (B, B, D) here (outer broadcast).
        # TODO(synk): degenerate S==1, B>1 quirk path (output shape changes) not implemented.
        raise NotImplementedError(
            "S == 1 with B > 1 changes the output shape to (B, B, D) in the original "
            "module; this degenerate path is not supported by the kernel.")
    else:
        raise ValueError(
            f"pe[:, :{B}] (shape (1,{min(B, max_len)},{D})) does not broadcast against "
            f"x of shape {x.shape}; the original PyTorch module would also fail here.")

    pe_add = pe_add.astype(x.dtype)              # halve pe bytes for bf16 activations

    # Lane-dense 2-D slabs: (B, S*D) with the long, 128-multiple axis on lanes.
    N = S * D
    x2 = x.reshape(B, N)
    pe2 = pe_add.reshape(1, N)

    itemsize = jnp.dtype(x.dtype).itemsize
    tb, tn = _choose_tiles(B, N, itemsize)
    grid = (B // tb, N // tn)

    out2 = pl.pallas_call(
        _pe_add_kernel,
        out_shape=jax.ShapeDtypeStruct((B, N), x.dtype),
        grid=grid,
        in_specs=[
            pl.BlockSpec((tb, tn), lambda i, j: (i, j)),   # x row-block
            pl.BlockSpec((1, tn), lambda i, j: (0, j)),    # shared pe row (resident over i)
        ],
        out_specs=pl.BlockSpec((tb, tn), lambda i, j: (i, j)),
        compiler_params=pltpu.CompilerParams(
            dimension_semantics=("parallel", "parallel"),
            vmem_limit_bytes=48 * 1024 * 1024,             # explicit; fits v7x's 64 MiB
        ),
    )(x2, pe2)

    return out2.reshape(B, S, D)


if __name__ == "__main__":
    d_model = 32
    max_len = 1000
    B = S = 8   # B must equal S (or B == 1) for the original module's broadcast to be valid

    key = jax.random.PRNGKey(0)
    x = jax.random.normal(key, (B, S, d_model), dtype=jnp.float32)

    pe = make_pe(d_model, max_len)
    out = positional_encoding_forward(x, pe, d_model, max_len)
    out = jax.block_until_ready(out)

    # Reference check (plain JAX, same math as the PyTorch forward).
    ref = x + pe[:, :x.shape[0]]
    assert out.shape == x.shape
    assert jnp.allclose(out, ref, atol=1e-6), "mismatch vs reference"

    # Also exercise the B == 1 broadcast path.
    x1 = jax.random.normal(jax.random.PRNGKey(1), (1, S, d_model), dtype=jnp.float32)
    out1 = jax.block_until_ready(positional_encoding_forward(x1, pe, d_model, max_len))
    ref1 = x1 + pe[:, :x1.shape[0]]
    assert jnp.allclose(out1, ref1, atol=1e-6), "mismatch vs reference (B==1)"

    print("KERNEL_OK")
</pallas_src>

<mosaic_0001>
module attributes {stable_mosaic.version = 11 : i64} {
  func.func @_pe_add_kernel(%arg0: i32, %arg1: i32, %arg2: memref<8x256xf32, #tpu.memory_space<vmem>>, %arg3: memref<1x256xf32, #tpu.memory_space<vmem>>, %arg4: memref<8x256xf32, #tpu.memory_space<vmem>>) attributes {dimension_semantics = [#tpu.dimension_semantics<parallel>, #tpu.dimension_semantics<parallel>], iteration_bounds = array<i64: 1, 1>, scalar_prefetch = 0 : i64, scratch_operands = 0 : i64, tpu.core_type = #tpu.core_type<tc>, window_params = [{transform_indices = @transform_0, window_bounds = array<i64: 8, 256>}, {transform_indices = @transform_1, window_bounds = array<i64: 1, 256>}, {transform_indices = @transform_2, window_bounds = array<i64: 8, 256>}]} {
    %c0 = arith.constant 0 : index
    %c0_0 = arith.constant 0 : index
    %0 = vector.load %arg2[%c0, %c0_0] : memref<8x256xf32, #tpu.memory_space<vmem>>, vector<8x256xf32>
    %c0_1 = arith.constant 0 : index
    %c0_2 = arith.constant 0 : index
    %1 = vector.load %arg3[%c0_1, %c0_2] : memref<1x256xf32, #tpu.memory_space<vmem>>, vector<1x256xf32>
    %2 = vector.broadcast %1 : vector<1x256xf32> to vector<8x256xf32>
    %3 = arith.addf %0, %2 : vector<8x256xf32>
    %c0_3 = arith.constant 0 : index
    %c0_4 = arith.constant 0 : index
    %4 = vector.load %arg4[%c0_3, %c0_4] : memref<8x256xf32, #tpu.memory_space<vmem>>, vector<8x256xf32>
    tpu.vector_store %arg4[%c0_3, %c0_4], %3 {strides = array<i32>} : memref<8x256xf32, #tpu.memory_space<vmem>>, vector<8x256xf32>,
    return
  }
  func.func @transform_0(%arg0: i32, %arg1: i32) -> (i32, i32) {
    %c0_i32 = arith.constant 0 : i32
    return %arg0, %arg1 : i32, i32
  }
  func.func @transform_1(%arg0: i32, %arg1: i32) -> (i32, i32) {
    %c0_i32 = arith.constant 0 : i32
    %c0_i32_0 = arith.constant 0 : i32
    return %c0_i32, %arg1 : i32, i32
  }
  func.func @transform_2(%arg0: i32, %arg1: i32) -> (i32, i32) {
    %c0_i32 = arith.constant 0 : i32
    return %arg0, %arg1 : i32, i32
  }
}

</mosaic_0001>

<llo_original>
// kernel: tpu_custom_call.1
$region0: #{tpu_custom_call.1}
  #allocation0 [shape = 'u32[]', space=smem, size = 0x4, offset = 0x4, fixed_abs, tag = 'smem constant byte address 0x4 - core index']
  #allocation1 [shape = 'u32[144,128]{1,0:T(1,128)}', space=vmem, size = 0x12000, scoped, tag = 'internal scratch']
  %s0 = inlined_call_operand.hbm [shape: f32[8,256], index: 0, kind: input, shape index: {}]
  %s1 = inlined_call_operand.vmem [shape: f32[1,256], index: 1, kind: input, shape index: {}]
  %s2 = inlined_call_operand.hbm [shape: f32[8,256], index: 2, kind: output, shape index: {}]
  %s3 = sld [smem:[#allocation0]]
  $region22: #{tpu_custom_call.1} parent=0
    _
  %s5 = ssub.s32 1, %s3
  %s6 = scalar_select 0, %s5, %s3
  $region1: #{tpu_custom_call.1} parent=0
    #allocation2 [shape = 'u8[8192]{0}', space=vmem, size = 0x2000, scoped, tag = 'input window, operand 0, single buffered']
    #allocation3 [shape = 's32[1]{0}', space=sflag, size = 0x4, scoped, tag = 'scoped memory for tpu_custom_call.1']
    #allocation4 [shape = 's32[1]{0}', space=sflag, size = 0x4, scoped, tag = 'scoped memory for tpu_custom_call.1']
    #allocation5 [shape = 'u8[8192]{0}', space=vmem, size = 0x2000, scoped, tag = 'output window, operand 0, single buffered']
    %7 = vsyncpa [#allocation3], 0
    %8 = vsyncpa [#allocation4], 0
    // Predicated region
    $region2: #{tpu_custom_call.1} parent=1 // pred_check
      _
    $region3: #{tpu_custom_call.1} parent=1 // pred_check_branch
      %10 = sbr.rel (0) target = $region5
    $region4: #{tpu_custom_call.1} parent=1 // pred_region
      %s12 = ssub.s32 256, 256
      %13 = vsyncadd [#allocation3], %s12
      %s15 = sshll.u32 [#allocation2], 4
      %s16 = int_to_ptr.vmem [resolvable:$true] %s15
      %18 = dma.hbm_to_vmem [thread:$0]  %s0, 256, %s16, [#allocation3]
    $region5: #{tpu_custom_call.1} parent=1 // pred_fallthru
      _
    // Predicated region
    $region6: #{tpu_custom_call.1} parent=1 // pred_check
      _
    $region7: #{tpu_custom_call.1} parent=1 // pred_check_branch
      %20 = sbr.rel (0) target = $region9
    $region8: #{tpu_custom_call.1} parent=1 // pred_region
      _
    $region9: #{tpu_custom_call.1} parent=1 // pred_fallthru
      _
    // Predicated region
    $region10: #{tpu_custom_call.1} parent=1 // pred_check
      _
    $region11: #{tpu_custom_call.1} parent=1 // pred_check_branch
      %22 = sbr.rel (0) target = $region13
    $region12: #{tpu_custom_call.1} parent=1 // pred_region
      %23 = dma.done [#allocation3], 256
    $region13: #{tpu_custom_call.1} parent=1 // pred_fallthru
      _
    %v24 = vld [vmem:[#allocation2] sm:$0xff]
    %v25 = vld [vmem:[#allocation2 + $0x8] sm:$0xff]
    %v26 = vld [vmem:[%s1] sm:$0x3]
    %v28 = vlaneseq
    %v29 = vshrl.u32 %v28, 7
    %v30 = vsub.s32 0, %v29
    %v31 = vrot.slane %v26, %v30
    %v32 = vlaneseq
    %v33 = vshrl.u32 %v32, 7
    %v34 = vsub.s32 1, %v33
    %v35 = vrot.slane %v26, %v34
    %v38 = vadd.f32 %v24, %v31
    %v39 = vadd.f32 %v25, %v35
    %40 = vst [vmem:[#allocation5] sm:$0xff] %v38
    %41 = vst [vmem:[#allocation5 + $0x8] sm:$0xff] %v39
    // Predicated region
    $region14: #{tpu_custom_call.1} parent=1 // pred_check
      _
    $region15: #{tpu_custom_call.1} parent=1 // pred_check_branch
      %43 = sbr.rel (0) target = $region17
    $region16: #{tpu_custom_call.1} parent=1 // pred_region
      %s45 = ssub.s32 256, 256
      %46 = vsyncadd [#allocation4], %s45
      %s48 = sshll.u32 [#allocation5], 4
      %s49 = int_to_ptr.vmem [resolvable:$true] %s48
      %51 = dma.vmem_to_hbm [thread:$0]  %s49, 256, %s2, [#allocation4]
    $region17: #{tpu_custom_call.1} parent=1 // pred_fallthru
      _
    // Predicated region
    $region18: #{tpu_custom_call.1} parent=1 // pred_check
      _
    $region19: #{tpu_custom_call.1} parent=1 // pred_check_branch
      %53 = sbr.rel (0) target = $region21
    $region20: #{tpu_custom_call.1} parent=1 // pred_region
      %54 = dma.done [#allocation4], 256
    $region21: #{tpu_custom_call.1} parent=1 // pred_fallthru
      _
    %55 = vsyncpa [#allocation3], 1
    %56 = vsyncpa [#allocation4], 1

</llo_original>
